<compile_context>
chip_gen: v7x
topology: tpu7x:2x2x1
jax: 0.10.0
libtpu: 0.0.40
codegen_flags: <defaults>
</compile_context>

<pallas_src>
import jax
import jax.numpy as jnp
from jax.experimental import pallas as pl
from jax.experimental.pallas import tpu as pltpu

_MAX_BLOCK_ROWS = 1024            # sublane-axis tile (multiple of 8) -> 4 MiB f32 blocks
_MAX_LANES = 1024                 # lane-axis tile (multiple of 128)
_VMEM_LIMIT_BYTES = 32 * 1024 * 1024   # covers 2x double-buffered 4 MiB blocks everywhere
_SMALL_N = 65536                  # below this, fused XLA x*w+b beats pallas_call overhead


def _linear_kernel(wb_ref, x_ref, o_ref):
    # wb_ref: SMEM (2,) f32 = [weight, bias]; x_ref / o_ref: (block_rows, lanes) VMEM.
    w = wb_ref[0]
    b = wb_ref[1]
    o_ref[...] = (x_ref[...] * w + b).astype(o_ref.dtype)


def _dimension_semantics():
    """CORE_PARALLEL only where it helps (v7x, 2 TCs); plain 'parallel' otherwise."""
    try:
        kind = jax.devices()[0].device_kind.lower()
    except Exception:  # pragma: no cover - defensive
        kind = ""
    core_parallel = getattr(pltpu, "CORE_PARALLEL", None)
    if core_parallel is not None and "7" in kind:
        return (core_parallel,)
    return ("parallel",)


def _choose_tiling(n):
    """Pick lane width, slab row count, and row-block size for N elements."""
    lanes = _MAX_LANES
    while lanes > 128 and lanes > n:      # shrink lanes for tiny inputs -> less padding
        lanes //= 2
    rows = pl.cdiv(n, lanes)              # slab rows; need NOT be tile-aligned
    if rows <= _MAX_BLOCK_ROWS:
        block_rows = rows                 # single block == full array dim (always legal)
    else:
        block_rows = _MAX_BLOCK_ROWS      # multiple of 8; last block may overhang
    return lanes, rows, block_rows


def linear_regression_forward(x, weight, bias, *, force_pallas=False):
    """x: (N, 1) f32, weight: (1, 1) f32, bias: (1,) f32 -> (N, 1) f32."""
    n, in_f = x.shape
    assert in_f == 1 and weight.shape == (1, 1) and bias.shape == (1,)

    # Small-N fast path: plain XLA fusion of a scalar multiply-add is strictly
    # faster than any pallas_call launch + DMA setup for tiny batches.
    if not force_pallas and n < _SMALL_N:
        return x * weight[0, 0] + bias[0]

    lanes, rows, block_rows = _choose_tiling(n)
    padded = rows * lanes
    n_tiles = pl.cdiv(rows, block_rows)

    # Lane-dense slab (last dim multiple of 128). Pad only to the next multiple
    # of `lanes` (<= 4 KiB), and skip the pad/slice entirely when N is aligned,
    # so the bandwidth-bound array is not re-streamed through HBM by XLA.
    flat = x.reshape(-1)
    if padded != n:
        flat = jnp.pad(flat, (0, padded - n))
    slab = flat.reshape(rows, lanes)

    # weight & bias as two f32 scalars in SMEM (kept f32 regardless of x.dtype).
    wb = jnp.concatenate([weight.reshape(1), bias.reshape(1)]).astype(jnp.float32)

    elem_bytes = x.dtype.itemsize
    out_slab = pl.pallas_call(
        _linear_kernel,
        out_shape=jax.ShapeDtypeStruct(slab.shape, x.dtype),
        grid_spec=pltpu.PrefetchScalarGridSpec(
            num_scalar_prefetch=0,
            grid=(n_tiles,),
            in_specs=[
                pl.BlockSpec(memory_space=pltpu.MemorySpace.SMEM),    # wb scalars
                pl.BlockSpec((block_rows, lanes), lambda i: (i, 0)),  # x row-tiles
            ],
            out_specs=pl.BlockSpec((block_rows, lanes), lambda i: (i, 0)),
        ),
        compiler_params=pltpu.CompilerParams(
            dimension_semantics=_dimension_semantics(),
            vmem_limit_bytes=_VMEM_LIMIT_BYTES,
        ),
        cost_estimate=pl.CostEstimate(
            flops=2 * padded,
            bytes_accessed=2 * elem_bytes * padded,   # read x + write y
            transcendentals=0,
        ),
    )(wb, slab)

    out_flat = out_slab.reshape(-1)
    if padded != n:
        out_flat = out_flat[:n]
    return out_flat.reshape(n, 1)


if __name__ == "__main__":
    key = jax.random.PRNGKey(0)
    k_x, k_w, k_b, k_x2 = jax.random.split(key, 4)

    in_features, out_features = 1, 1

    # torch.nn.Linear-style init: U(-1/sqrt(in_features), 1/sqrt(in_features)).
    bound = 1.0 / (in_features ** 0.5)
    weight = jax.random.uniform(
        k_w, (out_features, in_features), jnp.float32, -bound, bound)
    bias = jax.random.uniform(k_b, (out_features,), jnp.float32, -bound, bound)

    # Small demo batch; force the Pallas path so the kernel itself is exercised.
    x_small = jax.random.normal(k_x, (8, in_features), jnp.float32)
    y_small = linear_regression_forward(x_small, weight, bias, force_pallas=True)
    jax.block_until_ready(y_small)
    ref_small = x_small @ weight.T + bias
    assert y_small.shape == (8, out_features)
    assert jnp.allclose(y_small, ref_small, atol=1e-6, rtol=1e-6)

    # Lane-aligned batch: exercises the zero-pad / zero-slice streaming path.
    x_aligned = jax.random.normal(k_x2, (4096, in_features), jnp.float32)
    y_aligned = linear_regression_forward(x_aligned, weight, bias, force_pallas=True)
    jax.block_until_ready(y_aligned)
    ref_aligned = x_aligned @ weight.T + bias
    assert jnp.allclose(y_aligned, ref_aligned, atol=1e-6, rtol=1e-6)

    # Default small-N fast path (plain XLA) must agree as well.
    y_fast = linear_regression_forward(x_small, weight, bias)
    jax.block_until_ready(y_fast)
    assert jnp.allclose(y_fast, ref_small, atol=1e-6, rtol=1e-6)

    print("KERNEL_OK")
</pallas_src>

<mosaic_0001>
module attributes {stable_mosaic.version = 11 : i64} {
  func.func @_linear_kernel(%arg0: i32, %arg1: memref<2xf32, #tpu.memory_space<smem>>, %arg2: memref<1x128xf32, #tpu.memory_space<vmem>>, %arg3: memref<1x128xf32, #tpu.memory_space<vmem>>) attributes {dimension_semantics = [#tpu.dimension_semantics<parallel>], iteration_bounds = array<i64: 1>, scalar_prefetch = 0 : i64, scratch_operands = 0 : i64, tpu.core_type = #tpu.core_type<tc>, window_params = [{transform_indices = @transform_0, window_bounds = array<i64: 2>}, {transform_indices = @transform_1, window_bounds = array<i64: 1, 128>}, {transform_indices = @transform_2, window_bounds = array<i64: 1, 128>}]} {
    %c0 = arith.constant 0 : index
    %0 = memref.load %arg1[%c0] : memref<2xf32, #tpu.memory_space<smem>>
    %c1 = arith.constant 1 : index
    %1 = memref.load %arg1[%c1] : memref<2xf32, #tpu.memory_space<smem>>
    %c0_0 = arith.constant 0 : index
    %c0_1 = arith.constant 0 : index
    %2 = vector.load %arg2[%c0_0, %c0_1] : memref<1x128xf32, #tpu.memory_space<vmem>>, vector<1x128xf32>
    %3 = vector.broadcast %0 : f32 to vector<1x128xf32>
    %4 = arith.mulf %2, %3 : vector<1x128xf32>
    %5 = vector.broadcast %1 : f32 to vector<1x128xf32>
    %6 = arith.addf %4, %5 : vector<1x128xf32>
    %c0_2 = arith.constant 0 : index
    %c0_3 = arith.constant 0 : index
    %7 = vector.load %arg3[%c0_2, %c0_3] : memref<1x128xf32, #tpu.memory_space<vmem>>, vector<1x128xf32>
    tpu.vector_store %arg3[%c0_2, %c0_3], %6 {strides = array<i32>} : memref<1x128xf32, #tpu.memory_space<vmem>>, vector<1x128xf32>,
    return
  }
  func.func @transform_0(%arg0: i32) -> i32 {
    %c0_i32 = arith.constant 0 : i32
    %c0_i32_0 = arith.constant 0 : i32
    return %c0_i32 : i32
  }
  func.func @transform_1(%arg0: i32) -> (i32, i32) {
    %c0_i32 = arith.constant 0 : i32
    %c0_i32_0 = arith.constant 0 : i32
    return %arg0, %c0_i32 : i32, i32
  }
  func.func @transform_2(%arg0: i32) -> (i32, i32) {
    %c0_i32 = arith.constant 0 : i32
    %c0_i32_0 = arith.constant 0 : i32
    return %arg0, %c0_i32 : i32, i32
  }
}

</mosaic_0001>

<llo_original>
// kernel: tpu_custom_call.1
$region0: #{tpu_custom_call.1}
  #allocation0 [shape = 'u32[]', space=smem, size = 0x4, offset = 0x4, fixed_abs, tag = 'smem constant byte address 0x4 - core index']
  #allocation1 [shape = 'u32[144,128]{1,0:T(1,128)}', space=vmem, size = 0x12000, scoped, tag = 'internal scratch']
  %s0 = inlined_call_operand.hbm [shape: f32[2], index: 0, kind: input, shape index: {}]
  %s1 = inlined_call_operand.vmem [shape: f32[1,128], index: 1, kind: input, shape index: {}]
  %s2 = inlined_call_operand.hbm [shape: f32[1,128], index: 2, kind: output, shape index: {}]
  %s3 = sld [smem:[#allocation0]]
  $region22: #{tpu_custom_call.1} parent=0
    _
  %s5 = ssub.s32 1, %s3
  %s6 = scalar_select 0, %s5, %s3
  $region1: #{tpu_custom_call.1} parent=0
    #allocation2 [shape = 'u8[512]{0}', space=smem, size = 0x200, scoped, tag = 'input window, operand 0, single buffered']
    #allocation3 [shape = 's32[1]{0}', space=sflag, size = 0x4, scoped, tag = 'scoped memory for tpu_custom_call.1']
    #allocation4 [shape = 's32[1]{0}', space=sflag, size = 0x4, scoped, tag = 'scoped memory for tpu_custom_call.1']
    #allocation5 [shape = 'u8[512]{0}', space=vmem, size = 0x400, scoped, tag = 'output window, operand 0, single buffered']
    %7 = vsyncpa [#allocation4], 0
    %8 = vsyncpa [#allocation3], 0
    // Predicated region
    $region2: #{tpu_custom_call.1} parent=1 // pred_check
      _
    $region3: #{tpu_custom_call.1} parent=1 // pred_check_branch
      %10 = sbr.rel (0) target = $region5
    $region4: #{tpu_custom_call.1} parent=1 // pred_region
      %s12 = ssub.s32 16, 16
      %13 = vsyncadd [#allocation4], %s12
      %16 = dma.hbm_to_smem %s0, 16, [#allocation2], [#allocation4]
    $region5: #{tpu_custom_call.1} parent=1 // pred_fallthru
      _
    // Predicated region
    $region6: #{tpu_custom_call.1} parent=1 // pred_check
      _
    $region7: #{tpu_custom_call.1} parent=1 // pred_check_branch
      %18 = sbr.rel (0) target = $region9
    $region8: #{tpu_custom_call.1} parent=1 // pred_region
      _
    $region9: #{tpu_custom_call.1} parent=1 // pred_fallthru
      _
    // Predicated region
    $region10: #{tpu_custom_call.1} parent=1 // pred_check
      _
    $region11: #{tpu_custom_call.1} parent=1 // pred_check_branch
      %20 = sbr.rel (0) target = $region13
    $region12: #{tpu_custom_call.1} parent=1 // pred_region
      %21 = dma.done [#allocation4], 16
    $region13: #{tpu_custom_call.1} parent=1 // pred_fallthru
      _
    %22 = sfence
    %s23 = sld [smem:[#allocation2]]
    %s24 = sld [smem:[#allocation2 + $0x1]]
    %v25 = vld [vmem:[%s1] sm:$0x1]
    %v26 = vstv %s23
    %v27 = vmul.f32 %v25, %v26
    %v28 = vstv %s24
    %v29 = vadd.f32 %v27, %v28
    %30 = vst [vmem:[#allocation5] sm:$0x1] %v29
    // Predicated region
    $region14: #{tpu_custom_call.1} parent=1 // pred_check
      _
    $region15: #{tpu_custom_call.1} parent=1 // pred_check_branch
      %32 = sbr.rel (0) target = $region17
    $region16: #{tpu_custom_call.1} parent=1 // pred_region
      %s34 = ssub.s32 16, 16
      %35 = vsyncadd [#allocation3], %s34
      %s37 = sshll.u32 [#allocation5], 4
      %s38 = int_to_ptr.vmem [resolvable:$true] %s37
      %40 = dma.vmem_to_hbm [thread:$0]  %s38, 16, %s2, [#allocation3]
    $region17: #{tpu_custom_call.1} parent=1 // pred_fallthru
      _
    // Predicated region
    $region18: #{tpu_custom_call.1} parent=1 // pred_check
      _
    $region19: #{tpu_custom_call.1} parent=1 // pred_check_branch
      %42 = sbr.rel (0) target = $region21
    $region20: #{tpu_custom_call.1} parent=1 // pred_region
      %43 = dma.done [#allocation3], 16
    $region21: #{tpu_custom_call.1} parent=1 // pred_fallthru
      _
    %44 = vsyncpa [#allocation3], 1
    %45 = vsyncpa [#allocation4], 1

</llo_original>
